<compile_context>
chip_gen: v5e
topology: v5e:2x2
jax: 0.10.0
libtpu: 0.0.40
codegen_flags: <defaults>
</compile_context>

<pallas_src>
import functools

import numpy as np

import jax
import jax.numpy as jnp
from jax.experimental import pallas as pl
from jax.experimental.pallas import tpu as pltpu


# ------------------ pltpu.roll direction calibration (once) -----------------

_ROLL_MATCHES_JNP = None


def _roll_matches_jnp():
    """True iff pltpu.roll follows jnp.roll conventions (result[i] = x[i-shift])."""
    global _ROLL_MATCHES_JNP
    if _ROLL_MATCHES_JNP is None:
        ramp = jnp.arange(128, dtype=jnp.float32).reshape(1, 128)

        def _probe(x_ref, o_ref):
            o_ref[...] = pltpu.roll(x_ref[...], 1, axis=1)

        rolled = pl.pallas_call(
            _probe,
            out_shape=jax.ShapeDtypeStruct((1, 128), jnp.float32))(ramp)
        first = float(rolled[0, 0])
        if first == 127.0:          # result[i] = x[i - shift]  (jnp.roll)
            _ROLL_MATCHES_JNP = True
        elif first == 1.0:          # result[i] = x[i + shift]
            _ROLL_MATCHES_JNP = False
        else:
            raise RuntimeError(f"unexpected pltpu.roll behaviour: {first}")
    return _ROLL_MATCHES_JNP


# ------------------------------ fused kernel -------------------------------

def _biggan_d_kernel(x_ref, wc_ref, bc_ref, m_ref, e_ref, wl_ref, bl_ref,
                     o_ref, patches_ref, *,
                     W, conv_shapes, input_idx, blocks_cfg,
                     tap_rows, valid_rows, roll_fwd):
    """Whole BigGAN-D forward for one grid step (lane_batch images).

    x_ref      : (1, 8, LW)        input image(s), channels zero-padded to 8,
                                   LW = lane_batch * H * W lane-dense layout
    wc_ref     : (n_conv, 32, 128) packed conv weights (row i: [Cout_i, Kin_i])
    bc_ref     : (n_conv, 32, 1)   packed conv biases
    m_ref      : (32, LW)          host-precomputed tap / dilated-grid masks
    e_ref      : (LW, Bpad)        per-image head segment matrix (incl. valid mask)
    wl_ref     : (out_dim, C)      linear head weight (torch layout)
    bl_ref     : (out_dim, 1)      linear head bias
    o_ref      : (1, out_dim, Bpad)
    patches_ref: (72, LW)          persistent im2col scratch (VMEM)
    """
    f32 = jnp.float32
    LW = x_ref.shape[-1]
    CP = x_ref.shape[1]            # channel count of every 3x3-conv input (8)

    def mask(row):
        # Load a (1, LW) mask row from VMEM right where it is used.
        return m_ref[row:row + 1, :]

    def weights(idx):
        cout, kin, _ = conv_shapes[idx]
        w = wc_ref[idx][0:cout, 0:kin]           # (Cout, Kin)
        b = bc_ref[idx][0:cout, :]               # (Cout, 1)
        return w, b

    def relu(a):
        return jnp.maximum(a, 0.0)

    def shift(v, off):
        # result[:, p] = v[:, (p + off) % LW].  Wrapped lanes are only ever
        # consumed where a tap mask / dilated-grid invariant discards them.
        amt = (-off) % LW if roll_fwd else off % LW
        return pltpu.roll(v, amt, axis=1)

    def conv1x1(v, idx):
        w, b = weights(idx)
        return jnp.dot(w, v, preferred_element_type=f32) + b

    def conv3x3(v, idx, level):
        # im2col into the persistent VMEM scratch: tap t -> rows [8t, 8t+8),
        # then a single K = 9*Cin matmul.  Shifts are XLU rolls + tap masks.
        w, b = weights(idx)
        step = 1 << level
        for ky in range(3):
            for kx in range(3):
                t = ky * 3 + kx
                dy, dx = ky - 1, kx - 1
                if dy == 0 and dx == 0:
                    patches_ref[t * CP:(t + 1) * CP, :] = v
                else:
                    off = step * (dy * W + dx)
                    patches_ref[t * CP:(t + 1) * CP, :] = (
                        shift(v, off) * mask(tap_rows[(level, dy, dx)]))
        return jnp.dot(w, patches_ref[...], preferred_element_type=f32) + b

    def avgpool2(v, level):
        # AvgPool2d(2) on the dilated grid: 3 rolled adds + scale.  Valid
        # pooled lanes never read outside the image (H, W % 2**n_down == 0).
        step = 1 << level
        s = v
        for off in (step, step * W, step * (W + 1)):
            s = s + shift(v, off)
        return s * 0.25

    # ---- forward ----
    h = conv3x3(x_ref[0], input_idx, 0)          # input conv (no pre-relu)

    level = 0
    for conv_idx, downsample in blocks_cfg:
        i1, i2, i3, i4 = conv_idx
        x_blk = h
        t = conv1x1(relu(x_blk), i1)
        t = conv3x3(relu(t), i2, level)
        t = conv3x3(relu(t), i3, level)
        t = relu(t)
        if downsample:
            t = avgpool2(t, level)
            sc = avgpool2(x_blk, level)          # shortcut pools the block input
            level += 1
        else:
            sc = x_blk
        h = conv1x1(t, i4) + sc                  # residual add in-kernel
        if downsample:
            # Re-zero garbage (off-grid) lanes once per downsample so they can
            # never grow / poison anything downstream (review insurance).
            h = h * mask(valid_rows[level])

    # head: relu -> masked per-image spatial sum (segment matmul) -> linear.
    s = jnp.dot(relu(h), e_ref[...], preferred_element_type=f32)   # (C, Bpad)
    out = jnp.dot(wl_ref[...], s, preferred_element_type=f32) + bl_ref[...]
    o_ref[0] = out


# ----------------------------- model / wrapper ------------------------------

def d_arch(ch=64, attention='64'):
    # Mirror of D_arch for the resolution-32 configuration we instantiate.
    attn = [int(item) for item in attention.split('_')]
    return {
        32: {
            'in_channels': [c * ch for c in [4, 4, 4]],
            'out_channels': [c * ch for c in [4, 4, 4]],
            'downsample': [True, True, False, False],
            'resolution': [16, 16, 16, 16],
            'attention': {2 ** i: (2 ** i) in attn for i in range(2, 6)},
        },
    }


def sn_normalize(w_torch, u, num_itrs=1, eps=1e-12):
    """BigGAN spectral norm (power iteration) on a torch-layout weight."""
    O = w_torch.shape[0]
    W2 = w_torch.reshape(O, -1)

    def _norm(v):
        return v / jnp.maximum(jnp.linalg.norm(v), eps)

    v = None
    for _ in range(num_itrs):
        v = _norm(u @ W2)        # (1, K)
        u = _norm(v @ W2.T)      # (1, O)
    sigma = jnp.squeeze((v @ W2.T) @ u.T)
    return w_torch / sigma


class BigGANDiscriminatorPallas:
    def __init__(self, D_ch=8, D_depth=2, resolution=32, D_attn='64',
                 output_dim=1, SN_eps=1e-12, seed=1234):
        self.depth = D_depth
        self.arch = d_arch(D_ch, D_attn)[resolution]
        self.out_dim = output_dim
        self.in_ch_pad = 8                 # pad input 3->8 chans (zero weights)
        key = jax.random.PRNGKey(seed)

        def next_key():
            nonlocal key
            key, sub = jax.random.split(key)
            return sub

        w2d_list, b_list = [], []
        self.conv_shapes = []              # per conv: (Cout, Kin, ksize)

        def add_conv(cin, cout, k, pad_cin_to=None):
            # Deterministic synthetic init (torch (O,I,KH,KW) layout), spectral
            # norm (1 power iteration, as in SNConv2d.forward), then flatten to
            # the (Cout, KH*KW*Cin) im2col layout used by the kernel.
            w = 0.05 * jax.random.normal(next_key(), (cout, cin, k, k),
                                         jnp.float32)
            b = 0.02 * jax.random.normal(next_key(), (cout,), jnp.float32)
            u = jax.random.normal(next_key(), (1, cout), jnp.float32)
            w_sn = sn_normalize(w, u, num_itrs=1, eps=SN_eps)
            if pad_cin_to is not None and pad_cin_to > cin:
                w_sn = jnp.pad(w_sn,
                               ((0, 0), (0, pad_cin_to - cin), (0, 0), (0, 0)))
                cin = pad_cin_to
            if k == 1:
                w2d = w_sn[:, :, 0, 0]                        # (Cout, Cin)
            else:
                # row index = (ky*3 + kx)*Cin + ci  (matches the kernel taps)
                w2d = jnp.transpose(w_sn, (0, 2, 3, 1)).reshape(cout,
                                                                k * k * cin)
            idx = len(w2d_list)
            w2d_list.append(w2d)
            b_list.append(b)
            self.conv_shapes.append((cout, int(w2d.shape[1]), k))
            return idx

        # input conv: which_conv default -> kernel_size=3, padding=1
        self.input_idx = add_conv(3, self.arch['in_channels'][0], 3,
                                  pad_cin_to=self.in_ch_pad)

        blocks_cfg = []
        for index in range(len(self.arch['out_channels'])):
            for d_index in range(self.depth):
                cin = (self.arch['in_channels'][index] if d_index == 0
                       else self.arch['out_channels'][index])
                cout = self.arch['out_channels'][index]
                hid = cout // 4
                # The fused kernel stores each 3x3 tap as 8 sublanes of the
                # shared im2col scratch -> every 3x3 conv input must have the
                # same (8) channel count.
                assert hid == self.in_ch_pad, "hidden channels must equal 8"
                if cin != cout:
                    # TODO(synk): learnable shortcut (conv_sc + channel concat)
                    # not implemented - in_channels == out_channels everywhere
                    # in the resolution-32 arch, so it is never instantiated.
                    raise NotImplementedError('learnable shortcut unsupported')
                i1 = add_conv(cin, hid, 1)
                i2 = add_conv(hid, hid, 3)
                i3 = add_conv(hid, hid, 3)
                i4 = add_conv(hid, cout, 1)
                downsample = self.arch['downsample'][index] and d_index == 0
                blocks_cfg.append(((i1, i2, i3, i4), downsample))
            if self.arch['attention'][self.arch['resolution'][index]]:
                # TODO(synk): self-attention block not implemented - D_attn='64'
                # never activates it for the resolution-32 arch.
                raise NotImplementedError('attention block unsupported')
        self.blocks_cfg = tuple(blocks_cfg)
        self.conv_shapes = tuple(self.conv_shapes)

        # Static mask-row bookkeeping (values are built per (H, W, lane_batch)).
        self.n_down = sum(1 for _, ds in self.blocks_cfg if ds)
        self.tap_rows = {}
        row = 0
        for level in range(self.n_down + 1):
            for dy in (-1, 0, 1):
                for dx in (-1, 0, 1):
                    if dy == 0 and dx == 0:
                        continue
                    self.tap_rows[(level, dy, dx)] = row
                    row += 1
        self.valid_rows = {}
        for level in range(1, self.n_down + 1):
            self.valid_rows[level] = row
            row += 1
        self.n_mask_rows_padded = ((row + 7) // 8) * 8
        self._mask_cache = {}

        # Pack all conv weights/biases into aligned slabs (DMA'd once).
        cmax = ((max(s[0] for s in self.conv_shapes) + 7) // 8) * 8
        kmax = ((max(s[1] for s in self.conv_shapes) + 127) // 128) * 128
        self.Wc = jnp.stack([
            jnp.pad(w, ((0, cmax - w.shape[0]), (0, kmax - w.shape[1])))
            for w in w2d_list])                                  # (n, 32, 128)
        self.Bc = jnp.stack([
            jnp.pad(b.reshape(-1, 1), ((0, cmax - b.shape[0]), (0, 0)))
            for b in b_list])                                    # (n, 32, 1)

        cfin = self.arch['out_channels'][-1]
        w_lin = 0.05 * jax.random.normal(next_key(), (output_dim, cfin),
                                         jnp.float32)
        b_lin = 0.02 * jax.random.normal(next_key(), (output_dim,),
                                         jnp.float32)
        u_lin = jax.random.normal(next_key(), (1, output_dim), jnp.float32)
        w_lin_sn = sn_normalize(w_lin, u_lin, num_itrs=1, eps=SN_eps)
        self.wlt = w_lin_sn                                  # (out_dim, C)
        self.blt = b_lin.reshape(output_dim, 1)              # (out_dim, 1)
        self.wl = jnp.transpose(w_lin_sn)                    # (C, out_dim) ref
        self.bl = b_lin.reshape(1, output_dim)               # (1, out_dim) ref

        # Calibrate the lane-rotate direction once (outside any trace).
        self.roll_fwd = _roll_matches_jnp()

    # --- host-precomputed masks + per-image head segment matrix --------------
    def _masks_and_segments(self, H, W, lane_batch, Bpad):
        cache_key = (H, W, lane_batch, Bpad)
        if cache_key in self._mask_cache:
            return self._mask_cache[cache_key]
        HW = H * W
        idx = np.arange(HW, dtype=np.int64)
        yy, xx = idx // W, idx % W
        rows = np.zeros((self.n_mask_rows_padded, lane_batch * HW), np.float32)

        def put(r, m):
            rows[r, :] = np.tile(m.astype(np.float32), lane_batch)

        for (level, dy, dx), r in self.tap_rows.items():
            step = 1 << level
            oy, ox = yy + dy * step, xx + dx * step
            put(r, (oy >= 0) & (oy <= H - step) & (ox >= 0) & (ox <= W - step))
        for level, r in self.valid_rows.items():
            step = 1 << level
            put(r, (yy % step == 0) & (xx % step == 0))

        stepf = 1 << self.n_down
        valid_f = ((yy % stepf == 0) & (xx % stepf == 0)).astype(np.float32)
        seg = np.zeros((lane_batch * HW, Bpad), np.float32)
        for b in range(lane_batch):
            seg[b * HW:(b + 1) * HW, b] = valid_f

        out = (jnp.asarray(rows), jnp.asarray(seg))
        self._mask_cache[cache_key] = out
        return out

    def __call__(self, x_nchw, lane_batch=1):
        N, C, H, W = x_nchw.shape
        assert N % lane_batch == 0, "batch must be divisible by lane_batch"
        # AvgPool2d(2)-on-the-dilated-grid invariant (documented + asserted).
        assert H % (1 << self.n_down) == 0 and W % (1 << self.n_down) == 0, \
            "H, W must be divisible by 2**n_down"
        HW = H * W
        G = N // lane_batch
        LW = lane_batch * HW
        Bpad = max(8, ((lane_batch + 7) // 8) * 8)

        x = x_nchw.astype(jnp.float32)
        if C < self.in_ch_pad:
            x = jnp.pad(x, ((0, 0), (0, self.in_ch_pad - C), (0, 0), (0, 0)))
        # lane-dense layout: image b of a group occupies lanes [b*HW, (b+1)*HW)
        x = x.reshape(G, lane_batch, self.in_ch_pad, HW)
        x = jnp.transpose(x, (0, 2, 1, 3)).reshape(G, self.in_ch_pad, LW)

        masks, seg = self._masks_and_segments(H, W, lane_batch, Bpad)

        kernel = functools.partial(
            _biggan_d_kernel, W=W,
            conv_shapes=self.conv_shapes, input_idx=self.input_idx,
            blocks_cfg=self.blocks_cfg,
            tap_rows=self.tap_rows, valid_rows=self.valid_rows,
            roll_fwd=self.roll_fwd)

        out = pl.pallas_call(
            kernel,
            out_shape=jax.ShapeDtypeStruct((G, self.out_dim, Bpad),
                                           jnp.float32),
            grid=(G,),
            in_specs=[
                pl.BlockSpec((1, self.in_ch_pad, LW), lambda n: (n, 0, 0)),
                pl.BlockSpec(self.Wc.shape, lambda n: (0, 0, 0)),
                pl.BlockSpec(self.Bc.shape, lambda n: (0, 0, 0)),
                pl.BlockSpec(masks.shape, lambda n: (0, 0)),
                pl.BlockSpec(seg.shape, lambda n: (0, 0)),
                pl.BlockSpec(self.wlt.shape, lambda n: (0, 0)),
                pl.BlockSpec(self.blt.shape, lambda n: (0, 0)),
            ],
            out_specs=pl.BlockSpec((1, self.out_dim, Bpad),
                                   lambda n: (n, 0, 0)),
            scratch_shapes=[
                pltpu.VMEM((9 * self.in_ch_pad, LW), jnp.float32)],
            compiler_params=pltpu.CompilerParams(
                dimension_semantics=("parallel",),
                vmem_limit_bytes=32 * 1024 * 1024),
        )(x, self.Wc, self.Bc, masks, seg, self.wlt, self.blt)

        out = out[:, :, :lane_batch]                       # (G, out_dim, B)
        out = jnp.transpose(out, (0, 2, 1)).reshape(N, self.out_dim)
        return out


# ------------------------- pure-JAX reference check -------------------------

def _reference_forward(model, x_nchw):
    """Plain XLA reference of the same forward (numerical cross-check only)."""
    hp = jax.lax.Precision.HIGHEST
    N, C, H, W = x_nchw.shape
    x = x_nchw.astype(jnp.float32)
    if C < model.in_ch_pad:
        x = jnp.pad(x, ((0, 0), (0, model.in_ch_pad - C), (0, 0), (0, 0)))

    def conv(h, idx):
        cout, kin, k = model.conv_shapes[idx]
        cin = kin // (k * k)
        w = model.Wc[idx, :cout, :kin].reshape(cout, k, k, cin)
        w = jnp.transpose(w, (0, 3, 1, 2))                     # (O, I, KH, KW)
        b = model.Bc[idx, :cout, 0]
        pad = (k - 1) // 2
        y = jax.lax.conv_general_dilated(
            h, w, (1, 1), [(pad, pad), (pad, pad)],
            dimension_numbers=('NCHW', 'OIHW', 'NCHW'), precision=hp)
        return y + b.reshape(1, cout, 1, 1)

    def pool(h):
        n, c, hh, ww = h.shape
        return h.reshape(n, c, hh // 2, 2, ww // 2, 2).mean(axis=(3, 5))

    h = conv(x, model.input_idx)
    for (i1, i2, i3, i4), ds in model.blocks_cfg:
        xb = h
        t = conv(jax.nn.relu(xb), i1)
        t = conv(jax.nn.relu(t), i2)
        t = conv(jax.nn.relu(t), i3)
        t = jax.nn.relu(t)
        sc = xb
        if ds:
            t = pool(t)
            sc = pool(xb)
        t = conv(t, i4)
        h = t + sc
    s = jnp.sum(jax.nn.relu(h), axis=(2, 3))
    return jnp.dot(s, model.wl, precision=hp) + model.bl


if __name__ == "__main__":
    model = BigGANDiscriminatorPallas(D_ch=8, D_depth=2, resolution=32,
                                      D_attn='64', output_dim=1)
    x = jax.random.normal(jax.random.PRNGKey(0), (2, 3, 32, 32), jnp.float32)

    ref = _reference_forward(model, x)
    scale = float(jnp.max(jnp.abs(ref)))

    # Default: one image per grid step (v7x: one image per TensorCore).
    out1 = model(x)
    jax.block_until_ready(out1)
    assert out1.shape == (2, 1)

    # v5e/v6e lever: both images share the lane axis, grid=(1,), N doubled.
    out2 = model(x, lane_batch=2)
    jax.block_until_ready(out2)
    assert out2.shape == (2, 1)

    for out in (out1, out2):
        err = float(jnp.max(jnp.abs(out - ref)))
        # All-fp32 forward: observed error ~1e-5 relative; bound kept at 1e-3
        # for margin across MXU f32-emulation variants (20x tighter than before).
        assert err <= 1e-3 * (scale + 1.0), f"kernel/reference mismatch: {err}"

    print("KERNEL_OK")
</pallas_src>

<mosaic_0001>
module attributes {stable_mosaic.version = 11 : i64} {
  func.func @_probe(%arg0: memref<1x128xf32, #tpu.memory_space<vmem>>, %arg1: memref<1x128xf32, #tpu.memory_space<vmem>>) attributes {dimension_semantics = [], scalar_prefetch = 0 : i64, scratch_operands = 0 : i64, tpu.core_type = #tpu.core_type<tc>} {
    %c0 = arith.constant 0 : index
    %c0_0 = arith.constant 0 : index
    %0 = vector.load %arg0[%c0, %c0_0] : memref<1x128xf32, #tpu.memory_space<vmem>>, vector<1x128xf32>
    %c1_i32 = arith.constant 1 : i32
    %1 = tpu.dynamic_rotate %0 by %c1_i32 dim 1 : vector<1x128xf32>, i32 -> vector<1x128xf32>
    %c0_1 = arith.constant 0 : index
    %c0_2 = arith.constant 0 : index
    %2 = vector.load %arg1[%c0_1, %c0_2] : memref<1x128xf32, #tpu.memory_space<vmem>>, vector<1x128xf32>
    tpu.vector_store %arg1[%c0_1, %c0_2], %1 {strides = array<i32>} : memref<1x128xf32, #tpu.memory_space<vmem>>, vector<1x128xf32>,
    return
  }
}

</mosaic_0001>

<llo_original>
// kernel: tpu_custom_call.1
$region0: #{tpu_custom_call.1}
  #allocation0 [shape = 'u32[]', space=smem, size = 0x4, offset = 0x4, fixed_abs, tag = 'smem constant byte address 0x4 - core index']
  #allocation1 [shape = 'u32[72,128]{1,0:T(1,128)}', space=vmem, size = 0x9000, scoped, tag = 'internal scratch']
  %s0 = inlined_call_operand.hbm [shape: f32[1,128], index: 0, kind: input, shape index: {}]
  %s1 = inlined_call_operand.hbm [shape: f32[1,128], index: 1, kind: output, shape index: {}]
  %s2 = sld [smem:[#allocation0]]
  $region18: #{tpu_custom_call.1} parent=0
    _
  %s4 = ssub.s32 1, %s2
  %s5 = scalar_select 0, %s4, %s2
  $region1: #{tpu_custom_call.1} parent=0
    #allocation2 [shape = 'u8[512]{0}', space=vmem, size = 0x400, scoped, tag = 'input window, operand 0, single buffered']
    #allocation3 [shape = 's32[1]{0}', space=sflag, size = 0x4, scoped, tag = 'scoped memory for tpu_custom_call.1']
    #allocation4 [shape = 's32[1]{0}', space=sflag, size = 0x4, scoped, tag = 'scoped memory for tpu_custom_call.1']
    #allocation5 [shape = 'u8[512]{0}', space=vmem, size = 0x400, scoped, tag = 'output window, operand 0, single buffered']
    %6 = vsyncpa [#allocation3], 0
    %7 = vsyncpa [#allocation4], 0
    // Predicated region
    $region2: #{tpu_custom_call.1} parent=1 // pred_check
      _
    $region3: #{tpu_custom_call.1} parent=1 // pred_check_branch
      %9 = sbr.rel (0) target = $region5
    $region4: #{tpu_custom_call.1} parent=1 // pred_region
      %11 = vsyncadd [#allocation3], 0
      %s13 = sshll.u32 %s0, 4
      %s14 = int_to_ptr.hbm [resolvable:$true] %s13
      %s15 = sshll.u32 [#allocation2], 4
      %s16 = int_to_ptr.vmem [resolvable:$true] %s15
      %18 = dma.hbm_to_vmem [thread:$0]  %s14, 16, %s16, [#allocation3]
    $region5: #{tpu_custom_call.1} parent=1 // pred_fallthru
      _
    // Predicated region
    $region6: #{tpu_custom_call.1} parent=1 // pred_check
      _
    $region7: #{tpu_custom_call.1} parent=1 // pred_check_branch
      %20 = sbr.rel (0) target = $region9
    $region8: #{tpu_custom_call.1} parent=1 // pred_region
      %22 = dma.done [#allocation3], 16
    $region9: #{tpu_custom_call.1} parent=1 // pred_fallthru
      _
    %v23 = vld [vmem:[#allocation2] sm:$0x1]
    %24 = vrot.lane.b32.xlu0 %v23, 1
    %v25 = vpop.permute.xlu0 %24
    %26 = vst [vmem:[#allocation5] sm:$0x1] %v25
    // Predicated region
    $region10: #{tpu_custom_call.1} parent=1 // pred_check
      _
    $region11: #{tpu_custom_call.1} parent=1 // pred_check_branch
      %28 = sbr.rel (0) target = $region13
    $region12: #{tpu_custom_call.1} parent=1 // pred_region
      %30 = vsyncadd [#allocation4], 0
      %s32 = sshll.u32 [#allocation5], 4
      %s33 = int_to_ptr.vmem [resolvable:$true] %s32
      %s34 = sshll.u32 %s1, 4
      %s35 = int_to_ptr.hbm [resolvable:$true] %s34
      %37 = dma.vmem_to_hbm [thread:$0]  %s33, 16, %s35, [#allocation4]
    $region13: #{tpu_custom_call.1} parent=1 // pred_fallthru
      _
    // Predicated region
    $region14: #{tpu_custom_call.1} parent=1 // pred_check
      _
    $region15: #{tpu_custom_call.1} parent=1 // pred_check_branch
      %39 = sbr.rel (0) target = $region17
    $region16: #{tpu_custom_call.1} parent=1 // pred_region
      %41 = dma.done [#allocation4], 16
    $region17: #{tpu_custom_call.1} parent=1 // pred_fallthru
      _
    %42 = vsyncpa [#allocation3], 1
    %43 = vsyncpa [#allocation4], 1

</llo_original>
